<compile_context>
chip_gen: v7x
topology: tpu7x:2x2x1
jax: 0.10.0
libtpu: 0.0.40
codegen_flags: <defaults>
</compile_context>

<pallas_src>
import functools

import jax
import jax.numpy as jnp
from jax.experimental import pallas as pl
from jax.experimental.pallas import tpu as pltpu

INPUT_DIM = 130          # len(all_feat_cols)
OUTPUT_DIM = 5           # len(target_cols)
HIDDEN = 160             # hidden_units[1..3]
INPUT_PAD = 256          # input width padded to lane-aligned 256 (zero cols)
HIDDEN_PAD = 256         # hidden width padded to lane-aligned 256 (zero cols)
OUT_PAD = 8              # output padded 5 -> 8 (tiny writeback; == full dim)
BN_EPS = 1e-5


# ---------------------------------------------------------------------------
# Kernel: 4 matmuls + bias + 3 SiLUs (all BN affine terms pre-folded).
# ---------------------------------------------------------------------------
def _mlp_kernel(x_ref, w1_ref, w2_ref, w3_ref, w4_ref, bh_ref, bo_ref, o_ref,
                *, approx_silu):
    cdt = w1_ref.dtype                   # matmul-operand dtype (bf16 or f32)
    bh = bh_ref[...]                     # (3, HIDDEN_PAD) f32 hidden biases
    bo = bo_ref[...]                     # (1, OUT_PAD)    f32 output bias

    def silu(v):                         # f32 in -> cdt out (exp/recip on EUP)
        s = pl.reciprocal(1.0 + jnp.exp(-v), approx=approx_silu)
        return (v * s).astype(cdt)

    h = x_ref[...]                       # (tb, INPUT_PAD), already in cdt
    h = silu(jnp.dot(h, w1_ref[...],
                     preferred_element_type=jnp.float32) + bh[0:1, :])
    h = silu(jnp.dot(h, w2_ref[...],
                     preferred_element_type=jnp.float32) + bh[1:2, :])
    h = silu(jnp.dot(h, w3_ref[...],
                     preferred_element_type=jnp.float32) + bh[2:3, :])
    out = jnp.dot(h, w4_ref[...], preferred_element_type=jnp.float32) + bo
    o_ref[...] = out.astype(o_ref.dtype)


# ---------------------------------------------------------------------------
# Wrapper-side parameter folding (BN eval mode is affine -> fold into weights).
# ---------------------------------------------------------------------------
def _fold_bn(gamma, beta, mean, var, eps=BN_EPS):
    scale = gamma / jnp.sqrt(var + eps)
    shift = beta - mean * scale
    return scale, shift


def _prepare_params(params, compute_dtype):
    s0, t0 = _fold_bn(*params["bn0"])
    s1, t1 = _fold_bn(*params["bn1"])
    s2, t2 = _fold_bn(*params["bn2"])
    s3, t3 = _fold_bn(*params["bn3"])

    w1, b1 = params["w1"], params["b1"]
    w2, b2 = params["w2"], params["b2"]
    w3, b3 = params["w3"], params["b3"]
    w4, b4 = params["w4"], params["b4"]

    # bn0 folded into W1's rows, bn1..bn3 folded into the output columns.
    W1 = (s0[:, None] * w1) * s1[None, :]
    B1 = (t0 @ w1 + b1) * s1 + t1
    W2 = w2 * s2[None, :]
    B2 = b2 * s2 + t2
    W3 = w3 * s3[None, :]
    B3 = b3 * s3 + t3
    W4, B4 = w4, b4

    # Zero-pad: input 130->256 (rows of W1), hidden 160->256, output 5->8.
    # Padded rows/cols stay 0 through SiLU and contribute nothing downstream.
    ip = INPUT_PAD - INPUT_DIM
    hp = HIDDEN_PAD - HIDDEN
    op = OUT_PAD - OUTPUT_DIM
    W1 = jnp.pad(W1, ((0, ip), (0, hp)))
    W2 = jnp.pad(W2, ((0, hp), (0, hp)))
    W3 = jnp.pad(W3, ((0, hp), (0, hp)))
    W4 = jnp.pad(W4, ((0, hp), (0, op)))

    bh = jnp.zeros((3, HIDDEN_PAD), jnp.float32)
    bh = (bh.at[0, :HIDDEN].set(B1)
            .at[1, :HIDDEN].set(B2)
            .at[2, :HIDDEN].set(B3))
    bo = jnp.zeros((1, OUT_PAD), jnp.float32).at[0, :OUTPUT_DIM].set(B4)

    cdt = compute_dtype
    return W1.astype(cdt), W2.astype(cdt), W3.astype(cdt), W4.astype(cdt), bh, bo


def _pick_tb(B, ceiling=1024):
    """Batch tile.

    Small / oddly-sized batches -> single block (no useless grid steps on
    single-TC v5e/v6e).  Large batches -> largest multiple-of-8 tile <= ceiling
    that divides B, preferring an EVEN step count (v7x dual-TC sharding).
    """
    if B % 8 != 0 or B <= ceiling:
        return B
    best = None
    for cand in (2048, 1024, 512, 256, 128, 64, 32, 16, 8):
        if cand > ceiling:
            continue
        if B % cand == 0:
            if best is None:
                best = cand
            if (B // cand) % 2 == 0:
                return cand
    return best if best is not None else B


def mlp_forward(x, params, *, tb=None, compute_dtype=jnp.bfloat16):
    """x: [B, INPUT_DIM] float32 -> [B, OUTPUT_DIM] float32."""
    B, F = x.shape
    assert F == INPUT_DIM
    if tb is None:
        tb = _pick_tb(B)
    assert B % tb == 0
    assert tb == B or tb % 8 == 0

    W1, W2, W3, W4, bh, bo = _prepare_params(params, compute_dtype)

    # Lane-dense input: zero-pad 130 -> 256 and cast to the matmul dtype.
    xp = jnp.pad(x, ((0, 0), (0, INPUT_PAD - INPUT_DIM))).astype(compute_dtype)

    full = lambda shape: pl.BlockSpec(shape, lambda i: (0, 0))
    approx_silu = jnp.dtype(compute_dtype) != jnp.dtype(jnp.float32)

    grid_spec = pltpu.PrefetchScalarGridSpec(
        num_scalar_prefetch=0,
        grid=(B // tb,),
        in_specs=[
            pl.BlockSpec((tb, INPUT_PAD), lambda i: (i, 0)),   # x tile
            full((INPUT_PAD, HIDDEN_PAD)),                     # W1'
            full((HIDDEN_PAD, HIDDEN_PAD)),                    # W2'
            full((HIDDEN_PAD, HIDDEN_PAD)),                    # W3'
            full((HIDDEN_PAD, OUT_PAD)),                       # W4'
            full((3, HIDDEN_PAD)),                             # hidden biases
            full((1, OUT_PAD)),                                # output bias
        ],
        out_specs=pl.BlockSpec((tb, OUT_PAD), lambda i: (i, 0)),
    )

    out_padded = pl.pallas_call(
        functools.partial(_mlp_kernel, approx_silu=approx_silu),
        out_shape=jax.ShapeDtypeStruct((B, OUT_PAD), jnp.float32),
        grid_spec=grid_spec,
        compiler_params=pltpu.CompilerParams(
            dimension_semantics=("parallel",),
            vmem_limit_bytes=32 * 1024 * 1024),
    )(xp, W1, W2, W3, W4, bh, bo)

    return out_padded[:, :OUTPUT_DIM]


# ---------------------------------------------------------------------------
# Deterministic synthetic parameters + pure-JAX reference.
# ---------------------------------------------------------------------------
def make_params(key):
    ks = jax.random.split(key, 12)

    def linear(kw, kb, fan_in, fan_out):
        bound = 1.0 / jnp.sqrt(fan_in)
        w = jax.random.uniform(kw, (fan_in, fan_out), jnp.float32, -bound, bound)
        b = jax.random.uniform(kb, (fan_out,), jnp.float32, -bound, bound)
        return w, b

    def bn(kg, dim):
        g = 1.0 + 0.1 * jax.random.normal(kg, (dim,), jnp.float32)
        b = 0.05 * jax.random.normal(jax.random.fold_in(kg, 1), (dim,), jnp.float32)
        m = 0.1 * jax.random.normal(jax.random.fold_in(kg, 2), (dim,), jnp.float32)
        v = 1.0 + 0.1 * jax.random.uniform(jax.random.fold_in(kg, 3), (dim,), jnp.float32)
        return g, b, m, v

    w1, b1 = linear(ks[0], ks[1], INPUT_DIM, HIDDEN)
    w2, b2 = linear(ks[2], ks[3], HIDDEN, HIDDEN)
    w3, b3 = linear(ks[4], ks[5], HIDDEN, HIDDEN)
    w4, b4 = linear(ks[6], ks[7], HIDDEN, OUTPUT_DIM)

    return {
        "bn0": bn(ks[8], INPUT_DIM),
        "w1": w1, "b1": b1, "bn1": bn(ks[9], HIDDEN),
        "w2": w2, "b2": b2, "bn2": bn(ks[10], HIDDEN),
        "w3": w3, "b3": b3, "bn3": bn(ks[11], HIDDEN),
        "w4": w4, "b4": b4,
    }


def _reference(x, params):
    def bn(h, p):
        g, b, m, v = p
        return (h - m) / jnp.sqrt(v + BN_EPS) * g + b

    silu = lambda v: v * jax.nn.sigmoid(v)
    h = bn(x, params["bn0"])
    h = silu(bn(h @ params["w1"] + params["b1"], params["bn1"]))
    h = silu(bn(h @ params["w2"] + params["b2"], params["bn2"]))
    h = silu(bn(h @ params["w3"] + params["b3"], params["bn3"]))
    return h @ params["w4"] + params["b4"]


if __name__ == "__main__":
    key = jax.random.PRNGKey(0)
    kx, kp = jax.random.split(key)

    params = make_params(kp)

    # Small batch (single-block path), f32 operands: exact vs. reference.
    B = 8
    x = jax.random.normal(kx, (B, INPUT_DIM), jnp.float32)
    ref = _reference(x, params)

    out_f32 = jax.block_until_ready(
        mlp_forward(x, params, compute_dtype=jnp.float32))
    assert out_f32.shape == (B, OUTPUT_DIM)
    assert jnp.allclose(out_f32, ref, atol=1e-3, rtol=1e-3)

    # Default bf16 matmul-operand path (f32 accumulation): loose tolerance.
    out_bf16 = jax.block_until_ready(mlp_forward(x, params))
    assert out_bf16.shape == (B, OUTPUT_DIM)
    assert jnp.allclose(out_bf16, ref, atol=1e-1, rtol=1e-1)

    # Multi-step grid path (tb override -> 4 grid steps), default bf16.
    B2 = 256
    x2 = jax.random.normal(jax.random.fold_in(kx, 1), (B2, INPUT_DIM), jnp.float32)
    ref2 = _reference(x2, params)
    out2 = jax.block_until_ready(mlp_forward(x2, params, tb=64))
    assert out2.shape == (B2, OUTPUT_DIM)
    assert jnp.allclose(out2, ref2, atol=1e-1, rtol=1e-1)

    print("KERNEL_OK")
</pallas_src>

<mosaic_0001>
module attributes {stable_mosaic.version = 11 : i64} {
  func.func @_mlp_kernel(%arg0: i32, %arg1: memref<8x256xf32, #tpu.memory_space<vmem>>, %arg2: memref<256x256xf32, #tpu.memory_space<vmem>>, %arg3: memref<256x256xf32, #tpu.memory_space<vmem>>, %arg4: memref<256x256xf32, #tpu.memory_space<vmem>>, %arg5: memref<256x8xf32, #tpu.memory_space<vmem>>, %arg6: memref<3x256xf32, #tpu.memory_space<vmem>>, %arg7: memref<1x8xf32, #tpu.memory_space<vmem>>, %arg8: memref<8x8xf32, #tpu.memory_space<vmem>>) attributes {dimension_semantics = [#tpu.dimension_semantics<parallel>], iteration_bounds = array<i64: 1>, scalar_prefetch = 0 : i64, scratch_operands = 0 : i64, tpu.core_type = #tpu.core_type<tc>, window_params = [{transform_indices = @transform_0, window_bounds = array<i64: 8, 256>}, {pipeline_mode = #tpu.pipeline_mode<synchronous>, transform_indices = @transform_1, window_bounds = array<i64: 256, 256>}, {pipeline_mode = #tpu.pipeline_mode<synchronous>, transform_indices = @transform_2, window_bounds = array<i64: 256, 256>}, {pipeline_mode = #tpu.pipeline_mode<synchronous>, transform_indices = @transform_3, window_bounds = array<i64: 256, 256>}, {pipeline_mode = #tpu.pipeline_mode<synchronous>, transform_indices = @transform_4, window_bounds = array<i64: 256, 8>}, {pipeline_mode = #tpu.pipeline_mode<synchronous>, transform_indices = @transform_5, window_bounds = array<i64: 3, 256>}, {pipeline_mode = #tpu.pipeline_mode<synchronous>, transform_indices = @transform_6, window_bounds = array<i64: 1, 8>}, {transform_indices = @transform_7, window_bounds = array<i64: 8, 8>}]} {
    %c0 = arith.constant 0 : index
    %c0_0 = arith.constant 0 : index
    %0 = vector.load %arg6[%c0, %c0_0] : memref<3x256xf32, #tpu.memory_space<vmem>>, vector<3x256xf32>
    %c0_1 = arith.constant 0 : index
    %c0_2 = arith.constant 0 : index
    %1 = vector.load %arg7[%c0_1, %c0_2] : memref<1x8xf32, #tpu.memory_space<vmem>>, vector<1x8xf32>
    %c0_3 = arith.constant 0 : index
    %c0_4 = arith.constant 0 : index
    %2 = vector.load %arg1[%c0_3, %c0_4] : memref<8x256xf32, #tpu.memory_space<vmem>>, vector<8x256xf32>
    %c0_5 = arith.constant 0 : index
    %c0_6 = arith.constant 0 : index
    %3 = vector.load %arg2[%c0_5, %c0_6] : memref<256x256xf32, #tpu.memory_space<vmem>>, vector<256x256xf32>
    %cst = arith.constant dense<0.000000e+00> : vector<8x256xf32>
    %4 = tpu.matmul %2, %3, %cst {dimension_numbers = #tpu.dot_dimension_numbers<[1], [0], [0], [1], [0, 0, 1, 1], [], []>} : vector<8x256xf32>, vector<256x256xf32>, vector<8x256xf32> -> vector<8x256xf32>
    %5 = vector.extract_strided_slice %0 {offsets = [0, 0], sizes = [1, 256], strides = [1, 1]} : vector<3x256xf32> to vector<1x256xf32>
    %6 = vector.broadcast %5 : vector<1x256xf32> to vector<8x256xf32>
    %7 = arith.addf %4, %6 : vector<8x256xf32>
    %cst_7 = arith.constant 0.000000e+00 : f32
    %8 = vector.broadcast %cst_7 : f32 to vector<8x256xf32>
    %9 = arith.subf %8, %7 : vector<8x256xf32>
    %10 = math.exp %9 : vector<8x256xf32>
    %cst_8 = arith.constant 1.000000e+00 : f32
    %11 = vector.broadcast %cst_8 : f32 to vector<8x256xf32>
    %12 = arith.addf %11, %10 : vector<8x256xf32>
    %13 = tpu.reciprocal %12 : vector<8x256xf32> -> vector<8x256xf32>
    %14 = arith.mulf %7, %13 : vector<8x256xf32>
    %c0_9 = arith.constant 0 : index
    %c0_10 = arith.constant 0 : index
    %15 = vector.load %arg3[%c0_9, %c0_10] : memref<256x256xf32, #tpu.memory_space<vmem>>, vector<256x256xf32>
    %cst_11 = arith.constant dense<0.000000e+00> : vector<8x256xf32>
    %16 = tpu.matmul %14, %15, %cst_11 {dimension_numbers = #tpu.dot_dimension_numbers<[1], [0], [0], [1], [0, 0, 1, 1], [], []>} : vector<8x256xf32>, vector<256x256xf32>, vector<8x256xf32> -> vector<8x256xf32>
    %17 = vector.extract_strided_slice %0 {offsets = [1, 0], sizes = [1, 256], strides = [1, 1]} : vector<3x256xf32> to vector<1x256xf32>
    %18 = vector.broadcast %17 : vector<1x256xf32> to vector<8x256xf32>
    %19 = arith.addf %16, %18 : vector<8x256xf32>
    %cst_12 = arith.constant 0.000000e+00 : f32
    %20 = vector.broadcast %cst_12 : f32 to vector<8x256xf32>
    %21 = arith.subf %20, %19 : vector<8x256xf32>
    %22 = math.exp %21 : vector<8x256xf32>
    %cst_13 = arith.constant 1.000000e+00 : f32
    %23 = vector.broadcast %cst_13 : f32 to vector<8x256xf32>
    %24 = arith.addf %23, %22 : vector<8x256xf32>
    %25 = tpu.reciprocal %24 : vector<8x256xf32> -> vector<8x256xf32>
    %26 = arith.mulf %19, %25 : vector<8x256xf32>
    %c0_14 = arith.constant 0 : index
    %c0_15 = arith.constant 0 : index
    %27 = vector.load %arg4[%c0_14, %c0_15] : memref<256x256xf32, #tpu.memory_space<vmem>>, vector<256x256xf32>
    %cst_16 = arith.constant dense<0.000000e+00> : vector<8x256xf32>
    %28 = tpu.matmul %26, %27, %cst_16 {dimension_numbers = #tpu.dot_dimension_numbers<[1], [0], [0], [1], [0, 0, 1, 1], [], []>} : vector<8x256xf32>, vector<256x256xf32>, vector<8x256xf32> -> vector<8x256xf32>
    %29 = vector.extract_strided_slice %0 {offsets = [2, 0], sizes = [1, 256], strides = [1, 1]} : vector<3x256xf32> to vector<1x256xf32>
    %30 = vector.broadcast %29 : vector<1x256xf32> to vector<8x256xf32>
    %31 = arith.addf %28, %30 : vector<8x256xf32>
    %cst_17 = arith.constant 0.000000e+00 : f32
    %32 = vector.broadcast %cst_17 : f32 to vector<8x256xf32>
    %33 = arith.subf %32, %31 : vector<8x256xf32>
    %34 = math.exp %33 : vector<8x256xf32>
    %cst_18 = arith.constant 1.000000e+00 : f32
    %35 = vector.broadcast %cst_18 : f32 to vector<8x256xf32>
    %36 = arith.addf %35, %34 : vector<8x256xf32>
    %37 = tpu.reciprocal %36 : vector<8x256xf32> -> vector<8x256xf32>
    %38 = arith.mulf %31, %37 : vector<8x256xf32>
    %c0_19 = arith.constant 0 : index
    %c0_20 = arith.constant 0 : index
    %39 = vector.load %arg5[%c0_19, %c0_20] : memref<256x8xf32, #tpu.memory_space<vmem>>, vector<256x8xf32>
    %cst_21 = arith.constant dense<0.000000e+00> : vector<8x8xf32>
    %40 = tpu.matmul %38, %39, %cst_21 {dimension_numbers = #tpu.dot_dimension_numbers<[1], [0], [0], [1], [0, 0, 1, 1], [], []>} : vector<8x256xf32>, vector<256x8xf32>, vector<8x8xf32> -> vector<8x8xf32>
    %41 = vector.broadcast %1 : vector<1x8xf32> to vector<8x8xf32>
    %42 = arith.addf %40, %41 : vector<8x8xf32>
    %c0_22 = arith.constant 0 : index
    %c0_23 = arith.constant 0 : index
    %43 = vector.load %arg8[%c0_22, %c0_23] : memref<8x8xf32, #tpu.memory_space<vmem>>, vector<8x8xf32>
    tpu.vector_store %arg8[%c0_22, %c0_23], %42 {strides = array<i32>} : memref<8x8xf32, #tpu.memory_space<vmem>>, vector<8x8xf32>,
    return
  }
  func.func @transform_0(%arg0: i32) -> (i32, i32) {
    %c0_i32 = arith.constant 0 : i32
    %c0_i32_0 = arith.constant 0 : i32
    return %arg0, %c0_i32 : i32, i32
  }
  func.func @transform_1(%arg0: i32) -> (i32, i32) {
    %c0_i32 = arith.constant 0 : i32
    %c0_i32_0 = arith.constant 0 : i32
    %c0_i32_1 = arith.constant 0 : i32
    return %c0_i32, %c0_i32_0 : i32, i32
  }
  func.func @transform_2(%arg0: i32) -> (i32, i32) {
    %c0_i32 = arith.constant 0 : i32
    %c0_i32_0 = arith.constant 0 : i32
    %c0_i32_1 = arith.constant 0 : i32
    return %c0_i32, %c0_i32_0 : i32, i32
  }
  func.func @transform_3(%arg0: i32) -> (i32, i32) {
    %c0_i32 = arith.constant 0 : i32
    %c0_i32_0 = arith.constant 0 : i32
    %c0_i32_1 = arith.constant 0 : i32
    return %c0_i32, %c0_i32_0 : i32, i32
  }
  func.func @transform_4(%arg0: i32) -> (i32, i32) {
    %c0_i32 = arith.constant 0 : i32
    %c0_i32_0 = arith.constant 0 : i32
    %c0_i32_1 = arith.constant 0 : i32
    return %c0_i32, %c0_i32_0 : i32, i32
  }
  func.func @transform_5(%arg0: i32) -> (i32, i32) {
    %c0_i32 = arith.constant 0 : i32
    %c0_i32_0 = arith.constant 0 : i32
    %c0_i32_1 = arith.constant 0 : i32
    return %c0_i32, %c0_i32_0 : i32, i32
  }
  func.func @transform_6(%arg0: i32) -> (i32, i32) {
    %c0_i32 = arith.constant 0 : i32
    %c0_i32_0 = arith.constant 0 : i32
    %c0_i32_1 = arith.constant 0 : i32
    return %c0_i32, %c0_i32_0 : i32, i32
  }
  func.func @transform_7(%arg0: i32) -> (i32, i32) {
    %c0_i32 = arith.constant 0 : i32
    %c0_i32_0 = arith.constant 0 : i32
    return %arg0, %c0_i32 : i32, i32
  }
}

</mosaic_0001>

<llo_original>
// kernel: tpu_custom_call.1
$region0: #{tpu_custom_call.1}
  #allocation0 [shape = 'u32[]', space=smem, size = 0x4, offset = 0x4, fixed_abs, tag = 'smem constant byte address 0x4 - core index']
  #allocation1 [shape = 'u32[144,128]{1,0:T(1,128)}', space=vmem, size = 0x12000, scoped, tag = 'internal scratch']
  %s0 = inlined_call_operand.vmem [shape: f32[8,256], index: 0, kind: input, shape index: {}]
  %s1 = inlined_call_operand.hbm [shape: f32[256,256], index: 1, kind: input, shape index: {}]
  %s2 = inlined_call_operand.hbm [shape: f32[256,256], index: 2, kind: input, shape index: {}]
  %s3 = inlined_call_operand.hbm [shape: f32[256,256], index: 3, kind: input, shape index: {}]
  %s4 = inlined_call_operand.vmem [shape: f32[256,8], index: 4, kind: input, shape index: {}]
  %s5 = inlined_call_operand.vmem [shape: f32[3,256], index: 5, kind: input, shape index: {}]
  %s6 = inlined_call_operand.vmem [shape: f32[1,8], index: 6, kind: input, shape index: {}]
  %s7 = inlined_call_operand.hbm [shape: f32[8,8], index: 7, kind: output, shape index: {}]
  %s8 = sld [smem:[#allocation0]]
  $region50: #{tpu_custom_call.1} parent=0
    _
  %s10 = ssub.s32 1, %s8
  %s11 = scalar_select 0, %s10, %s8
  $region1: #{tpu_custom_call.1} parent=0
    #allocation2 [shape = 'u8[262144]{0}', space=vmem, size = 0x40000, scoped, tag = 'input window, operand 1, single buffered']
    #allocation3 [shape = 's32[1]{0}', space=sflag, size = 0x4, scoped, tag = 'scoped memory for tpu_custom_call.1']
    #allocation4 [shape = 's32[1]{0}', space=sflag, size = 0x4, scoped, tag = 'scoped memory for tpu_custom_call.1']
    #allocation5 [shape = 'u8[262144]{0}', space=vmem, size = 0x40000, scoped, tag = 'input window, operand 2, single buffered']
    #allocation6 [shape = 's32[1]{0}', space=sflag, size = 0x4, scoped, tag = 'scoped memory for tpu_custom_call.1']
    #allocation7 [shape = 'u8[262144]{0}', space=vmem, size = 0x40000, scoped, tag = 'input window, operand 3, single buffered']
    #allocation8 [shape = 'u8[4096]{0}', space=vmem, size = 0x1000, scoped, tag = 'output window, operand 0, single buffered']
    %12 = vsyncpa [#allocation3], 0
    %13 = vsyncpa [#allocation6], 0
    %14 = vsyncpa [#allocation4], 0
    // Predicated region
    $region2: #{tpu_custom_call.1} parent=1 // pred_check
      _
    $region3: #{tpu_custom_call.1} parent=1 // pred_check_branch
      %16 = sbr.rel (0) target = $region5
    $region4: #{tpu_custom_call.1} parent=1 // pred_region
      _
    $region5: #{tpu_custom_call.1} parent=1 // pred_fallthru
      _
    // Predicated region
    $region6: #{tpu_custom_call.1} parent=1 // pred_check
      _
    $region7: #{tpu_custom_call.1} parent=1 // pred_check_branch
      %18 = sbr.rel (0) target = $region9
    $region8: #{tpu_custom_call.1} parent=1 // pred_region
      %s20 = ssub.s32 8192, 8192
      %21 = vsyncadd [#allocation3], %s20
      %s22 = sshll.u32 [#allocation2], 4
      %s23 = int_to_ptr.vmem [resolvable:$true] %s22
      %28 = dma.hbm_to_vmem [thread:$0]  %s1, 8192, %s23, [#allocation3], 256, 256, 16
    $region9: #{tpu_custom_call.1} parent=1 // pred_fallthru
      _
    // Predicated region
    $region10: #{tpu_custom_call.1} parent=1 // pred_check
      _
    $region11: #{tpu_custom_call.1} parent=1 // pred_check_branch
      %30 = sbr.rel (0) target = $region13
    $region12: #{tpu_custom_call.1} parent=1 // pred_region
      %s32 = ssub.s32 8192, 8192
      %33 = vsyncadd [#allocation6], %s32
      %s34 = sshll.u32 [#allocation5], 4
      %s35 = int_to_ptr.vmem [resolvable:$true] %s34
      %40 = dma.hbm_to_vmem [thread:$0]  %s2, 8192, %s35, [#allocation6], 256, 256, 16
    $region13: #{tpu_custom_call.1} parent=1 // pred_fallthru
      _
    // Predicated region
    $region14: #{tpu_custom_call.1} parent=1 // pred_check
      _
    $region15: #{tpu_custom_call.1} parent=1 // pred_check_branch
      %42 = sbr.rel (0) target = $region17
    $region16: #{tpu_custom_call.1} parent=1 // pred_region
      %s44 = ssub.s32 8192, 8192
      %45 = vsyncadd [#allocation6], %s44
      %s46 = sshll.u32 [#allocation7], 4
      %s47 = int_to_ptr.vmem [resolvable:$true] %s46
      %52 = dma.hbm_to_vmem [thread:$0]  %s3, 8192, %s47, [#allocation6], 256, 256, 16
    $region17: #{tpu_custom_call.1} parent=1 // pred_fallthru
      _
    // Predicated region
    $region18: #{tpu_custom_call.1} parent=1 // pred_check
      _
    $region19: #{tpu_custom_call.1} parent=1 // pred_check_branch
      %54 = sbr.rel (0) target = $region21
    $region20: #{tpu_custom_call.1} parent=1 // pred_region
      _
    $region21: #{tpu_custom_call.1} parent=1 // pred_fallthru
      _
    // Predicated region
    $region22: #{tpu_custom_call.1} parent=1 // pred_check
      _
    $region23: #{tpu_custom_call.1} parent=1 // pred_check_branch
      %56 = sbr.rel (0) target = $region25
    $region24: #{tpu_custom_call.1} parent=1 // pred_region
      _
    $region25: #{tpu_custom_call.1} parent=1 // pred_fallthru
      _
    // Predicated region
    $region26: #{tpu_custom_call.1} parent=1 // pred_check
      _
    $region27: #{tpu_custom_call.1} parent=1 // pred_check_branch
      %58 = sbr.rel (0) target = $region29
    $region28: #{tpu_custom_call.1} parent=1 // pred_region
      _
    $region29: #{tpu_custom_call.1} parent=1 // pred_fallthru
      _
    // Predicated region
    $region30: #{tpu_custom_call.1} parent=1 // pred_check
      _
    $region31: #{tpu_custom_call.1} parent=1 // pred_check_branch
      %60 = sbr.rel (0) target = $region33
    $region32: #{tpu_custom_call.1} parent=1 // pred_region
      %61 = dma.done [#allocation3], 8192
    $region33: #{tpu_custom_call.1} parent=1 // pred_fallthru
      _
    // Predicated region
    $region34: #{tpu_custom_call.1} parent=1 // pred_check
      _
    $region35: #{tpu_custom_call.1} parent=1 // pred_check_branch
      %63 = sbr.rel (0) target = $region37
    $region36: #{tpu_custom_call.1} parent=1 // pred_region
      %64 = dma.done [#allocation6], 8192
    $region37: #{tpu_custom_call.1} parent=1 // pred_fallthru
      _
    // Predicated region
    $region38: #{tpu_custom_call.1} parent=1 // pred_check
      _
    $region39: #{tpu_custom_call.1} parent=1 // pred_check_branch
      %66 = sbr.rel (0) target = $region41
    $region40: #{tpu_custom_call.1} parent=1 // pred_region
      %67 = dma.done [#allocation6], 8192
    $region41: #{tpu_custom_call.1} parent=1 // pred_fallthru
      _
    %v68 = vld [vmem:[%s5] sm:$0x77]
    %v69 = vld [vmem:[%s6] sm:$0x1]
    %v70 = vld [vmem:[%s0] sm:$0xff]
    %v71 = vld [vmem:[%s0 + $0x8] sm:$0xff]
    %v72 = vld [vmem:[#allocation2] sm:$0xff]
    %v73 = vld [vmem:[#allocation2 + $0x8] sm:$0xff]
    %v74 = vld [vmem:[#allocation2 + $0x10] sm:$0xff]
    %v75 = vld [vmem:[#allocation2 + $0x18] sm:$0xff]
    %v76 = vld [vmem:[#allocation2 + $0x20] sm:$0xff]
    %v77 = vld [vmem:[#allocation2 + $0x28] sm:$0xff]
    %v78 = vld [vmem:[#allocation2 + $0x30] sm:$0xff]
    %v79 = vld [vmem:[#allocation2 + $0x38] sm:$0xff]
    %v80 = vld [vmem:[#allocation2 + $0x40] sm:$0xff]
    %v81 = vld [vmem:[#allocation2 + $0x48] sm:$0xff]
    %v82 = vld [vmem:[#allocation2 + $0x50] sm:$0xff]
    %v83 = vld [vmem:[#allocation2 + $0x58] sm:$0xff]
    %v84 = vld [vmem:[#allocation2 + $0x60] sm:$0xff]
    %v85 = vld [vmem:[#allocation2 + $0x68] sm:$0xff]
    %v86 = vld [vmem:[#allocation2 + $0x70] sm:$0xff]
    %v87 = vld [vmem:[#allocation2 + $0x78] sm:$0xff]
    %v88 = vld [vmem:[#allocation2 + $0x80] sm:$0xff]
    %v89 = vld [vmem:[#allocation2 + $0x88] sm:$0xff]
    %v90 = vld [vmem:[#allocation2 + $0x90] sm:$0xff]
    %v91 = vld [vmem:[#allocation2 + $0x98] sm:$0xff]
    %v92 = vld [vmem:[#allocation2 + $0xa0] sm:$0xff]
    %v93 = vld [vmem:[#allocation2 + $0xa8] sm:$0xff]
    %v94 = vld [vmem:[#allocation2 + $0xb0] sm:$0xff]
    %v95 = vld [vmem:[#allocation2 + $0xb8] sm:$0xff]
    %v96 = vld [vmem:[#allocation2 + $0xc0] sm:$0xff]
    %v97 = vld [vmem:[#allocation2 + $0xc8] sm:$0xff]
    %v98 = vld [vmem:[#allocation2 + $0xd0] sm:$0xff]
    %v99 = vld [vmem:[#allocation2 + $0xd8] sm:$0xff]
    %v100 = vld [vmem:[#allocation2 + $0xe0] sm:$0xff]
    %v101 = vld [vmem:[#allocation2 + $0xe8] sm:$0xff]
    %v102 = vld [vmem:[#allocation2 + $0xf0] sm:$0xff]
    %v103 = vld [vmem:[#allocation2 + $0xf8] sm:$0xff]
    %v104 = vld [vmem:[#allocation2 + $0x100] sm:$0xff]
    %v105 = vld [vmem:[#allocation2 + $0x108] sm:$0xff]
    %v106 = vld [vmem:[#allocation2 + $0x110] sm:$0xff]
    %v107 = vld [vmem:[#allocation2 + $0x118] sm:$0xff]
    %v108 = vld [vmem:[#allocation2 + $0x120] sm:$0xff]
    %v109 = vld [vmem:[#allocation2 + $0x128] sm:$0xff]
    %v110 = vld [vmem:[#allocation2 + $0x130] sm:$0xff]
    %v111 = vld [vmem:[#allocation2 + $0x138] sm:$0xff]
    %v112 = vld [vmem:[#allocation2 + $0x140] sm:$0xff]
    %v113 = vld [vmem:[#allocation2 + $0x148] sm:$0xff]
    %v114 = vld [vmem:[#allocation2 + $0x150] sm:$0xff]
    %v115 = vld [vmem:[#allocation2 + $0x158] sm:$0xff]
    %v116 = vld [vmem:[#allocation2 + $0x160] sm:$0xff]
    %v117 = vld [vmem:[#allocation2 + $0x168] sm:$0xff]
    %v118 = vld [vmem:[#allocation2 + $0x170] sm:$0xff]
    %v119 = vld [vmem:[#allocation2 + $0x178] sm:$0xff]
    %v120 = vld [vmem:[#allocation2 + $0x180] sm:$0xff]
    %v121 = vld [vmem:[#allocation2 + $0x188] sm:$0xff]
    %v122 = vld [vmem:[#allocation2 + $0x190] sm:$0xff]
    %v123 = vld [vmem:[#allocation2 + $0x198] sm:$0xff]
    %v124 = vld [vmem:[#allocation2 + $0x1a0] sm:$0xff]
    %v125 = vld [vmem:[#allocation2 + $0x1a8] sm:$0xff]
    %v126 = vld [vmem:[#allocation2 + $0x1b0] sm:$0xff]
    %v127 = vld [vmem:[#allocation2 + $0x1b8] sm:$0xff]
    %v128 = vld [vmem:[#allocation2 + $0x1c0] sm:$0xff]
    %v129 = vld [vmem:[#allocation2 + $0x1c8] sm:$0xff]
    %v130 = vld [vmem:[#allocation2 + $0x1d0] sm:$0xff]
    %v131 = vld [vmem:[#allocation2 + $0x1d8] sm:$0xff]
    %v132 = vld [vmem:[#allocation2 + $0x1e0] sm:$0xff]
    %v133 = vld [vmem:[#allocation2 + $0x1e8] sm:$0xff]
    %v134 = vld [vmem:[#allocation2 + $0x1f0] sm:$0xff]
    %v135 = vld [vmem:[#allocation2 + $0x1f8] sm:$0xff]
    %v137 = vlaneseq
    %v138 = vshrl.u32 %v137, 7
    %v139 = vsub.s32 0, %v138
    %v140 = vrot.slane %v68, %v139
    %v141 = vlaneseq
    %v142 = vshrl.u32 %v141, 7
    %v143 = vsub.s32 4, %v142
    %v144 = vrot.slane %v68, %v143
    %v147 = vlaneseq
    %v148 = vshrl.u32 %v147, 7
    %v149 = vsub.s32 0, %v148
    %v150 = vrot.slane %v140, %v149
    %v151 = vlaneseq
    %v152 = vshrl.u32 %v151, 7
    %v153 = vsub.s32 0, %v152
    %v154 = vrot.slane %v144, %v153
    %155 = vmatprep.subr.mxu0 %v73
    %156 = vmatpush1.msra.mxu0 %v72
    %157 = vmatprep.subr.mxu0 %v75
    %158 = vmatpush1.msra.mxu0 %v74
    %159 = vmatprep.subr.mxu0 %v77
    %160 = vmatpush1.msra.mxu0 %v76
    %161 = vmatprep.subr.mxu0 %v79
    %162 = vmatpush1.msra.mxu0 %v78
    %163 = vmatprep.subr.mxu0 %v81
    %164 = vmatpush1.msra.mxu0 %v80
    %165 = vmatprep.subr.mxu0 %v83
    %166 = vmatpush1.msra.mxu0 %v82
    %167 = vmatprep.subr.mxu0 %v85
    %168 = vmatpush1.msra.mxu0 %v84
    %169 = vmatprep.subr.mxu0 %v87
    %170 = vmatpush1.msra.mxu0 %v86
    %171 = vmatprep.subr.mxu0 %v89
    %172 = vmatpush1.msra.mxu0 %v88
    %173 = vmatprep.subr.mxu0 %v91
    %174 = vmatpush1.msra.mxu0 %v90
    %175 = vmatprep.subr.mxu0 %v93
    %176 = vmatpush1.msra.mxu0 %v92
    %177 = vmatprep.subr.mxu0 %v95
    %178 = vmatpush1.msra.mxu0 %v94
    %179 = vmatprep.subr.mxu0 %v97
    %180 = vmatpush1.msra.mxu0 %v96
    %181 = vmatprep.subr.mxu0 %v99
    %182 = vmatpush1.msra.mxu0 %v98
    %183 = vmatprep.subr.mxu0 %v101
    %184 = vmatpush1.msra.mxu0 %v100
    %185 = vmatprep.subr.mxu0 %v103
    %186 = vmatpush1.msra.mxu0 %v102
    %187 = vmatprep.subr.mxu0 %v105
    %188 = vmatpush1.msra.mxu0 %v104
    %189 = vmatprep.subr.mxu0 %v107
    %190 = vmatpush1.msra.mxu0 %v106
    %191 = vmatprep.subr.mxu0 %v109
    %192 = vmatpush1.msra.mxu0 %v108
    %193 = vmatprep.subr.mxu0 %v111
    %194 = vmatpush1.msra.mxu0 %v110
    %195 = vmatprep.subr.mxu0 %v113
    %196 = vmatpush1.msra.mxu0 %v112
    %197 = vmatprep.subr.mxu0 %v115
    %198 = vmatpush1.msra.mxu0 %v114
    %199 = vmatprep.subr.mxu0 %v117
    %200 = vmatpush1.msra.mxu0 %v116
    %201 = vmatprep.subr.mxu0 %v119
    %202 = vmatpush1.msra.mxu0 %v118
    %203 = vmatprep.subr.mxu0 %v121
    %204 = vmatpush1.msra.mxu0 %v120
    %205 = vmatprep.subr.mxu0 %v123
    %206 = vmatpush1.msra.mxu0 %v122
    %207 = vmatprep.subr.mxu0 %v125
    %208 = vmatpush1.msra.mxu0 %v124
    %209 = vmatprep.subr.mxu0 %v127
    %210 = vmatpush1.msra.mxu0 %v126
    %211 = vmatprep.subr.mxu0 %v129
    %212 = vmatpush1.msra.mxu0 %v128
    %213 = vmatprep.subr.mxu0 %v131
    %214 = vmatpush1.msra.mxu0 %v130
    %215 = vmatprep.subr.mxu0 %v133
    %216 = vmatpush1.msra.mxu0 %v132
    %217 = vmatprep.subr.mxu0 %v135
    %218 = vmatpush1.msra.mxu0 %v134
    %219 = vmatprep.mubr.f32.mxu0 %v71
    %220 = vmatmul.mubr.f32.gmra.mrb[0].mxu0 %v70
    %v221 = vpop.f32.mrb[0].mxu0
    %v222 = vadd.f32 %v150, %v221
    %v223 = vpop.f32.mrb[0].mxu0
    %v224 = vadd.f32 %v154, %v223
    %225 = vdwg.mxu0
    %v226 = vsub.f32 0.0, %v222
    %v227 = vsub.f32 0.0, %v224
    %v228 = vmul.f32 %v226, 1.442695
    %v229 = vpow.pop %v228
    %v230 = vmul.f32 %v227, 1.442695
    %v231 = vpow.pop %v230
    %v232 = vadd.f32 %v229, 1.0
    %v233 = vadd.f32 %v231, 1.0
    %v234 = vrcp.pop %v232
    %v235 = vrcp.pop %v233
    %v236 = vmul.f32 %v222, %v234
    %v237 = vmul.f32 %v224, %v235
    %v238 = vld [vmem:[#allocation5] sm:$0xff]
    %v239 = vld [vmem:[#allocation5 + $0x8] sm:$0xff]
    %v240 = vld [vmem:[#allocation5 + $0x10] sm:$0xff]
    %v241 = vld [vmem:[#allocation5 + $0x18] sm:$0xff]
    %v242 = vld [vmem:[#allocation5 + $0x20] sm:$0xff]
    %v243 = vld [vmem:[#allocation5 + $0x28] sm:$0xff]
    %v244 = vld [vmem:[#allocation5 + $0x30] sm:$0xff]
    %v245 = vld [vmem:[#allocation5 + $0x38] sm:$0xff]
    %v246 = vld [vmem:[#allocation5 + $0x40] sm:$0xff]
    %v247 = vld [vmem:[#allocation5 + $0x48] sm:$0xff]
    %v248 = vld [vmem:[#allocation5 + $0x50] sm:$0xff]
    %v249 = vld [vmem:[#allocation5 + $0x58] sm:$0xff]
    %v250 = vld [vmem:[#allocation5 + $0x60] sm:$0xff]
    %v251 = vld [vmem:[#allocation5 + $0x68] sm:$0xff]
    %v252 = vld [vmem:[#allocation5 + $0x70] sm:$0xff]
    %v253 = vld [vmem:[#allocation5 + $0x78] sm:$0xff]
    %v254 = vld [vmem:[#allocation5 + $0x80] sm:$0xff]
    %v255 = vld [vmem:[#allocation5 + $0x88] sm:$0xff]
    %v256 = vld [vmem:[#allocation5 + $0x90] sm:$0xff]
    %v257 = vld [vmem:[#allocation5 + $0x98] sm:$0xff]
    %v258 = vld [vmem:[#allocation5 + $0xa0] sm:$0xff]
    %v259 = vld [vmem:[#allocation5 + $0xa8] sm:$0xff]
    %v260 = vld [vmem:[#allocation5 + $0xb0] sm:$0xff]
    %v261 = vld [vmem:[#allocation5 + $0xb8] sm:$0xff]
    %v262 = vld [vmem:[#allocation5 + $0xc0] sm:$0xff]
    %v263 = vld [vmem:[#allocation5 + $0xc8] sm:$0xff]
    %v264 = vld [vmem:[#allocation5 + $0xd0] sm:$0xff]
    %v265 = vld [vmem:[#allocation5 + $0xd8] sm:$0xff]
    %v266 = vld [vmem:[#allocation5 + $0xe0] sm:$0xff]
    %v267 = vld [vmem:[#allocation5 + $0xe8] sm:$0xff]
    %v268 = vld [vmem:[#allocation5 + $0xf0] sm:$0xff]
    %v269 = vld [vmem:[#allocation5 + $0xf8] sm:$0xff]
    %v270 = vld [vmem:[#allocation5 + $0x100] sm:$0xff]
    %v271 = vld [vmem:[#allocation5 + $0x108] sm:$0xff]
    %v272 = vld [vmem:[#allocation5 + $0x110] sm:$0xff]
    %v273 = vld [vmem:[#allocation5 + $0x118] sm:$0xff]
    %v274 = vld [vmem:[#allocation5 + $0x120] sm:$0xff]
    %v275 = vld [vmem:[#allocation5 + $0x128] sm:$0xff]
    %v276 = vld [vmem:[#allocation5 + $0x130] sm:$0xff]
    %v277 = vld [vmem:[#allocation5 + $0x138] sm:$0xff]
    %v278 = vld [vmem:[#allocation5 + $0x140] sm:$0xff]
    %v279 = vld [vmem:[#allocation5 + $0x148] sm:$0xff]
    %v280 = vld [vmem:[#allocation5 + $0x150] sm:$0xff]
    %v281 = vld [vmem:[#allocation5 + $0x158] sm:$0xff]
    %v282 = vld [vmem:[#allocation5 + $0x160] sm:$0xff]
    %v283 = vld [vmem:[#allocation5 + $0x168] sm:$0xff]
    %v284 = vld [vmem:[#allocation5 + $0x170] sm:$0xff]
    %v285 = vld [vmem:[#allocation5 + $0x178] sm:$0xff]
    %v286 = vld [vmem:[#allocation5 + $0x180] sm:$0xff]
    %v287 = vld [vmem:[#allocation5 + $0x188] sm:$0xff]
    %v288 = vld [vmem:[#allocation5 + $0x190] sm:$0xff]
    %v289 = vld [vmem:[#allocation5 + $0x198] sm:$0xff]
    %v290 = vld [vmem:[#allocation5 + $0x1a0] sm:$0xff]
    %v291 = vld [vmem:[#allocation5 + $0x1a8] sm:$0xff]
    %v292 = vld [vmem:[#allocation5 + $0x1b0] sm:$0xff]
    %v293 = vld [vmem:[#allocation5 + $0x1b8] sm:$0xff]
    %v294 = vld [vmem:[#allocation5 + $0x1c0] sm:$0xff]
    %v295 = vld [vmem:[#allocation5 + $0x1c8] sm:$0xff]
    %v296 = vld [vmem:[#allocation5 + $0x1d0] sm:$0xff]
    %v297 = vld [vmem:[#allocation5 + $0x1d8] sm:$0xff]
    %v298 = vld [vmem:[#allocation5 + $0x1e0] sm:$0xff]
    %v299 = vld [vmem:[#allocation5 + $0x1e8] sm:$0xff]
    %v300 = vld [vmem:[#allocation5 + $0x1f0] sm:$0xff]
    %v301 = vld [vmem:[#allocation5 + $0x1f8] sm:$0xff]
    %v302 = vlaneseq
    %v303 = vshrl.u32 %v302, 7
    %v304 = vsub.s32 1, %v303
    %v305 = vrot.slane %v68, %v304
    %v306 = vlaneseq
    %v307 = vshrl.u32 %v306, 7
    %v308 = vsub.s32 5, %v307
    %v309 = vrot.slane %v68, %v308
    %v312 = vlaneseq
    %v313 = vshrl.u32 %v312, 7
    %v314 = vsub.s32 1, %v313
    %v315 = vrot.slane %v305, %v314
    %v316 = vlaneseq
    %v317 = vshrl.u32 %v316, 7
    %v318 = vsub.s32 1, %v317
    %v319 = vrot.slane %v309, %v318
    %320 = vmatprep.subr.mxu0 %v239
    %321 = vmatpush1.msra.mxu0 %v238
    %322 = vmatprep.subr.mxu0 %v241
    %323 = vmatpush1.msra.mxu0 %v240
    %324 = vmatprep.subr.mxu0 %v243
    %325 = vmatpush1.msra.mxu0 %v242
    %326 = vmatprep.subr.mxu0 %v245
    %327 = vmatpush1.msra.mxu0 %v244
    %328 = vmatprep.subr.mxu0 %v247
    %329 = vmatpush1.msra.mxu0 %v246
    %330 = vmatprep.subr.mxu0 %v249
    %331 = vmatpush1.msra.mxu0 %v248
    %332 = vmatprep.subr.mxu0 %v251
    %333 = vmatpush1.msra.mxu0 %v250
    %334 = vmatprep.subr.mxu0 %v253
    %335 = vmatpush1.msra.mxu0 %v252
    %336 = vmatprep.subr.mxu0 %v255
    %337 = vmatpush1.msra.mxu0 %v254
    %338 = vmatprep.subr.mxu0 %v257
    %339 = vmatpush1.msra.mxu0 %v256
    %340 = vmatprep.subr.mxu0 %v259
    %341 = vmatpush1.msra.mxu0 %v258
    %342 = vmatprep.subr.mxu0 %v261
    %343 = vmatpush1.msra.mxu0 %v260
    %344 = vmatprep.subr.mxu0 %v263
    %345 = vmatpush1.msra.mxu0 %v262
    %346 = vmatprep.subr.mxu0 %v265
    %347 = vmatpush1.msra.mxu0 %v264
    %348 = vmatprep.subr.mxu0 %v267
    %349 = vmatpush1.msra.mxu0 %v266
    %350 = vmatprep.subr.mxu0 %v269
    %351 = vmatpush1.msra.mxu0 %v268
    %352 = vmatprep.subr.mxu0 %v271
    %353 = vmatpush1.msra.mxu0 %v270
    %354 = vmatprep.subr.mxu0 %v273
    %355 = vmatpush1.msra.mxu0 %v272
    %356 = vmatprep.subr.mxu0 %v275
    %357 = vmatpush1.msra.mxu0 %v274
    %358 = vmatprep.subr.mxu0 %v277
    %359 = vmatpush1.msra.mxu0 %v276
    %360 = vmatprep.subr.mxu0 %v279
    %361 = vmatpush1.msra.mxu0 %v278
    %362 = vmatprep.subr.mxu0 %v281
    %363 = vmatpush1.msra.mxu0 %v280
    %364 = vmatprep.subr.mxu0 %v283
    %365 = vmatpush1.msra.mxu0 %v282
    %366 = vmatprep.subr.mxu0 %v285
    %367 = vmatpush1.msra.mxu0 %v284
    %368 = vmatprep.subr.mxu0 %v287
    %369 = vmatpush1.msra.mxu0 %v286
    %370 = vmatprep.subr.mxu0 %v289
    %371 = vmatpush1.msra.mxu0 %v288
    %372 = vmatprep.subr.mxu0 %v291
    %373 = vmatpush1.msra.mxu0 %v290
    %374 = vmatprep.subr.mxu0 %v293
    %375 = vmatpush1.msra.mxu0 %v292
    %376 = vmatprep.subr.mxu0 %v295
    %377 = vmatpush1.msra.mxu0 %v294
    %378 = vmatprep.subr.mxu0 %v297
    %379 = vmatpush1.msra.mxu0 %v296
    %380 = vmatprep.subr.mxu0 %v299
    %381 = vmatpush1.msra.mxu0 %v298
    %382 = vmatprep.subr.mxu0 %v301
    %383 = vmatpush1.msra.mxu0 %v300
    %384 = vmatprep.mubr.f32.mxu0 %v237
    %385 = vmatmul.mubr.f32.gmra.mrb[0].mxu0 %v236
    %v386 = vpop.f32.mrb[0].mxu0
    %v387 = vadd.f32 %v315, %v386
    %v388 = vpop.f32.mrb[0].mxu0
    %v389 = vadd.f32 %v319, %v388
    %390 = vdwg.mxu0
    %v391 = vsub.f32 0.0, %v387
    %v392 = vsub.f32 0.0, %v389
    %v393 = vmul.f32 %v391, 1.442695
    %v394 = vpow.pop %v393
    %v395 = vmul.f32 %v392, 1.442695
    %v396 = vpow.pop %v395
    %v397 = vadd.f32 %v394, 1.0
    %v398 = vadd.f32 %v396, 1.0
    %v399 = vrcp.pop %v397
    %v400 = vrcp.pop %v398
    %v401 = vmul.f32 %v387, %v399
    %v402 = vmul.f32 %v389, %v400
    %v403 = vld [vmem:[#allocation7] sm:$0xff]
    %v404 = vld [vmem:[#allocation7 + $0x8] sm:$0xff]
    %v405 = vld [vmem:[#allocation7 + $0x10] sm:$0xff]
    %v406 = vld [vmem:[#allocation7 + $0x18] sm:$0xff]
    %v407 = vld [vmem:[#allocation7 + $0x20] sm:$0xff]
    %v408 = vld [vmem:[#allocation7 + $0x28] sm:$0xff]
    %v409 = vld [vmem:[#allocation7 + $0x30] sm:$0xff]
    %v410 = vld [vmem:[#allocation7 + $0x38] sm:$0xff]
    %v411 = vld [vmem:[#allocation7 + $0x40] sm:$0xff]
    %v412 = vld [vmem:[#allocation7 + $0x48] sm:$0xff]
    %v413 = vld [vmem:[#allocation7 + $0x50] sm:$0xff]
    %v414 = vld [vmem:[#allocation7 + $0x58] sm:$0xff]
    %v415 = vld [vmem:[#allocation7 + $0x60] sm:$0xff]
    %v416 = vld [vmem:[#allocation7 + $0x68] sm:$0xff]
    %v417 = vld [vmem:[#allocation7 + $0x70] sm:$0xff]
    %v418 = vld [vmem:[#allocation7 + $0x78] sm:$0xff]
    %v419 = vld [vmem:[#allocation7 + $0x80] sm:$0xff]
    %v420 = vld [vmem:[#allocation7 + $0x88] sm:$0xff]
    %v421 = vld [vmem:[#allocation7 + $0x90] sm:$0xff]
    %v422 = vld [vmem:[#allocation7 + $0x98] sm:$0xff]
    %v423 = vld [vmem:[#allocation7 + $0xa0] sm:$0xff]
    %v424 = vld [vmem:[#allocation7 + $0xa8] sm:$0xff]
    %v425 = vld [vmem:[#allocation7 + $0xb0] sm:$0xff]
    %v426 = vld [vmem:[#allocation7 + $0xb8] sm:$0xff]
    %v427 = vld [vmem:[#allocation7 + $0xc0] sm:$0xff]
    %v428 = vld [vmem:[#allocation7 + $0xc8] sm:$0xff]
    %v429 = vld [vmem:[#allocation7 + $0xd0] sm:$0xff]
    %v430 = vld [vmem:[#allocation7 + $0xd8] sm:$0xff]
    %v431 = vld [vmem:[#allocation7 + $0xe0] sm:$0xff]
    %v432 = vld [vmem:[#allocation7 + $0xe8] sm:$0xff]
    %v433 = vld [vmem:[#allocation7 + $0xf0] sm:$0xff]
    %v434 = vld [vmem:[#allocation7 + $0xf8] sm:$0xff]
    %v435 = vld [vmem:[#allocation7 + $0x100] sm:$0xff]
    %v436 = vld [vmem:[#allocation7 + $0x108] sm:$0xff]
    %v437 = vld [vmem:[#allocation7 + $0x110] sm:$0xff]
    %v438 = vld [vmem:[#allocation7 + $0x118] sm:$0xff]
    %v439 = vld [vmem:[#allocation7 + $0x120] sm:$0xff]
    %v440 = vld [vmem:[#allocation7 + $0x128] sm:$0xff]
    %v441 = vld [vmem:[#allocation7 + $0x130] sm:$0xff]
    %v442 = vld [vmem:[#allocation7 + $0x138] sm:$0xff]
    %v443 = vld [vmem:[#allocation7 + $0x140] sm:$0xff]
    %v444 = vld [vmem:[#allocation7 + $0x148] sm:$0xff]
    %v445 = vld [vmem:[#allocation7 + $0x150] sm:$0xff]
    %v446 = vld [vmem:[#allocation7 + $0x158] sm:$0xff]
    %v447 = vld [vmem:[#allocation7 + $0x160] sm:$0xff]
    %v448 = vld [vmem:[#allocation7 + $0x168] sm:$0xff]
    %v449 = vld [vmem:[#allocation7 + $0x170] sm:$0xff]
    %v450 = vld [vmem:[#allocation7 + $0x178] sm:$0xff]
    %v451 = vld [vmem:[#allocation7 + $0x180] sm:$0xff]
    %v452 = vld [vmem:[#allocation7 + $0x188] sm:$0xff]
    %v453 = vld [vmem:[#allocation7 + $0x190] sm:$0xff]
    %v454 = vld [vmem:[#allocation7 + $0x198] sm:$0xff]
    %v455 = vld [vmem:[#allocation7 + $0x1a0] sm:$0xff]
    %v456 = vld [vmem:[#allocation7 + $0x1a8] sm:$0xff]
    %v457 = vld [vmem:[#allocation7 + $0x1b0] sm:$0xff]
    %v458 = vld [vmem:[#allocation7 + $0x1b8] sm:$0xff]
    %v459 = vld [vmem:[#allocation7 + $0x1c0] sm:$0xff]
    %v460 = vld [vmem:[#allocation7 + $0x1c8] sm:$0xff]
    %v461 = vld [vmem:[#allocation7 + $0x1d0] sm:$0xff]
    %v462 = vld [vmem:[#allocation7 + $0x1d8] sm:$0xff]
    %v463 = vld [vmem:[#allocation7 + $0x1e0] sm:$0xff]
    %v464 = vld [vmem:[#allocation7 + $0x1e8] sm:$0xff]
    %v465 = vld [vmem:[#allocation7 + $0x1f0] sm:$0xff]
    %v466 = vld [vmem:[#allocation7 + $0x1f8] sm:$0xff]
    %v467 = vlaneseq
    %v468 = vshrl.u32 %v467, 7
    %v469 = vsub.s32 2, %v468
    %v470 = vrot.slane %v68, %v469
    %v471 = vlaneseq
    %v472 = vshrl.u32 %v471, 7
    %v473 = vsub.s32 6, %v472
    %v474 = vrot.slane %v68, %v473
    %v477 = vlaneseq
    %v478 = vshrl.u32 %v477, 7
    %v479 = vsub.s32 2, %v478
    %v480 = vrot.slane %v470, %v479
    %v481 = vlaneseq
    %v482 = vshrl.u32 %v481, 7
    %v483 = vsub.s32 2, %v482
    %v484 = vrot.slane %v474, %v483
    %485 = vmatprep.subr.mxu0 %v404
    %486 = vmatpush1.msra.mxu0 %v403
    %487 = vmatprep.subr.mxu0 %v406
    %488 = vmatpush1.msra.mxu0 %v405
    %489 = vmatprep.subr.mxu0 %v408
    %490 = vmatpush1.msra.mxu0 %v407
    %491 = vmatprep.subr.mxu0 %v410
    %492 = vmatpush1.msra.mxu0 %v409
    %493 = vmatprep.subr.mxu0 %v412
    %494 = vmatpush1.msra.mxu0 %v411
    %495 = vmatprep.subr.mxu0 %v414
    %496 = vmatpush1.msra.mxu0 %v413
    %497 = vmatprep.subr.mxu0 %v416
    %498 = vmatpush1.msra.mxu0 %v415
    %499 = vmatprep.subr.mxu0 %v418
    %500 = vmatpush1.msra.mxu0 %v417
    %501 = vmatprep.subr.mxu0 %v420
    %502 = vmatpush1.msra.mxu0 %v419
    %503 = vmatprep.subr.mxu0 %v422
    %504 = vmatpush1.msra.mxu0 %v421
    %505 = vmatprep.subr.mxu0 %v424
    %506 = vmatpush1.msra.mxu0 %v423
    %507 = vmatprep.subr.mxu0 %v426
    %508 = vmatpush1.msra.mxu0 %v425
    %509 = vmatprep.subr.mxu0 %v428
    %510 = vmatpush1.msra.mxu0 %v427
    %511 = vmatprep.subr.mxu0 %v430
    %512 = vmatpush1.msra.mxu0 %v429
    %513 = vmatprep.subr.mxu0 %v432
    %514 = vmatpush1.msra.mxu0 %v431
    %515 = vmatprep.subr.mxu0 %v434
    %516 = vmatpush1.msra.mxu0 %v433
    %517 = vmatprep.subr.mxu0 %v436
    %518 = vmatpush1.msra.mxu0 %v435
    %519 = vmatprep.subr.mxu0 %v438
    %520 = vmatpush1.msra.mxu0 %v437
    %521 = vmatprep.subr.mxu0 %v440
    %522 = vmatpush1.msra.mxu0 %v439
    %523 = vmatprep.subr.mxu0 %v442
    %524 = vmatpush1.msra.mxu0 %v441
    %525 = vmatprep.subr.mxu0 %v444
    %526 = vmatpush1.msra.mxu0 %v443
    %527 = vmatprep.subr.mxu0 %v446
    %528 = vmatpush1.msra.mxu0 %v445
    %529 = vmatprep.subr.mxu0 %v448
    %530 = vmatpush1.msra.mxu0 %v447
    %531 = vmatprep.subr.mxu0 %v450
    %532 = vmatpush1.msra.mxu0 %v449
    %533 = vmatprep.subr.mxu0 %v452
    %534 = vmatpush1.msra.mxu0 %v451
    %535 = vmatprep.subr.mxu0 %v454
    %536 = vmatpush1.msra.mxu0 %v453
    %537 = vmatprep.subr.mxu0 %v456
    %538 = vmatpush1.msra.mxu0 %v455
    %539 = vmatprep.subr.mxu0 %v458
    %540 = vmatpush1.msra.mxu0 %v457
    %541 = vmatprep.subr.mxu0 %v460
    %542 = vmatpush1.msra.mxu0 %v459
    %543 = vmatprep.subr.mxu0 %v462
    %544 = vmatpush1.msra.mxu0 %v461
    %545 = vmatprep.subr.mxu0 %v464
    %546 = vmatpush1.msra.mxu0 %v463
    %547 = vmatprep.subr.mxu0 %v466
    %548 = vmatpush1.msra.mxu0 %v465
    %549 = vmatprep.mubr.f32.mxu0 %v402
    %550 = vmatmul.mubr.f32.gmra.mrb[0].mxu0 %v401
    %v551 = vpop.f32.mrb[0].mxu0
    %v552 = vadd.f32 %v480, %v551
    %v553 = vpop.f32.mrb[0].mxu0
    %v554 = vadd.f32 %v484, %v553
    %555 = vdwg.mxu0
    %v556 = vsub.f32 0.0, %v552
    %v557 = vsub.f32 0.0, %v554
    %v558 = vmul.f32 %v556, 1.442695
    %v559 = vpow.pop %v558
    %v560 = vmul.f32 %v557, 1.442695
    %v561 = vpow.pop %v560
    %v562 = vadd.f32 %v559, 1.0
    %v563 = vadd.f32 %v561, 1.0
    %v564 = vrcp.pop %v562
    %v565 = vrcp.pop %v563
    %v566 = vmul.f32 %v552, %v564
    %v567 = vmul.f32 %v554, %v565
    %v568 = vld [vmem:[%s4] sm:$0xff]
    %v569 = vld [vmem:[%s4 + $0x8] sm:$0xff]
    %v570 = vld [vmem:[%s4 + $0x10] sm:$0xff]
    %v571 = vld [vmem:[%s4 + $0x18] sm:$0xff]
    %v572 = vld [vmem:[%s4 + $0x20] sm:$0xff]
    %v573 = vld [vmem:[%s4 + $0x28] sm:$0xff]
    %v574 = vld [vmem:[%s4 + $0x30] sm:$0xff]
    %v575 = vld [vmem:[%s4 + $0x38] sm:$0xff]
    %v576 = vld [vmem:[%s4 + $0x40] sm:$0xff]
    %v577 = vld [vmem:[%s4 + $0x48] sm:$0xff]
    %v578 = vld [vmem:[%s4 + $0x50] sm:$0xff]
    %v579 = vld [vmem:[%s4 + $0x58] sm:$0xff]
    %v580 = vld [vmem:[%s4 + $0x60] sm:$0xff]
    %v581 = vld [vmem:[%s4 + $0x68] sm:$0xff]
    %v582 = vld [vmem:[%s4 + $0x70] sm:$0xff]
    %v583 = vld [vmem:[%s4 + $0x78] sm:$0xff]
    %v584 = vld [vmem:[%s4 + $0x80] sm:$0xff]
    %v585 = vld [vmem:[%s4 + $0x88] sm:$0xff]
    %v586 = vld [vmem:[%s4 + $0x90] sm:$0xff]
    %v587 = vld [vmem:[%s4 + $0x98] sm:$0xff]
    %v588 = vld [vmem:[%s4 + $0xa0] sm:$0xff]
    %v589 = vld [vmem:[%s4 + $0xa8] sm:$0xff]
    %v590 = vld [vmem:[%s4 + $0xb0] sm:$0xff]
    %v591 = vld [vmem:[%s4 + $0xb8] sm:$0xff]
    %v592 = vld [vmem:[%s4 + $0xc0] sm:$0xff]
    %v593 = vld [vmem:[%s4 + $0xc8] sm:$0xff]
    %v594 = vld [vmem:[%s4 + $0xd0] sm:$0xff]
    %v595 = vld [vmem:[%s4 + $0xd8] sm:$0xff]
    %v596 = vld [vmem:[%s4 + $0xe0] sm:$0xff]
    %v597 = vld [vmem:[%s4 + $0xe8] sm:$0xff]
    %v598 = vld [vmem:[%s4 + $0xf0] sm:$0xff]
    %v599 = vld [vmem:[%s4 + $0xf8] sm:$0xff]
    %v601 = vlaneseq
    %v602 = vshrl.u32 %v601, 7
    %v603 = vsub.s32 0, %v602
    %v604 = vrot.slane %v69, %v603
    %606 = vmatprep.subr.mxu0 0.0
    %607 = vmatpush1.msra.mxu0 %v568
    %608 = vmatprep.subr.mxu0 0.0
    %609 = vmatpush1.msra.mxu0 %v569
    %610 = vmatprep.subr.mxu0 0.0
    %611 = vmatpush1.msra.mxu0 %v570
    %612 = vmatprep.subr.mxu0 0.0
    %613 = vmatpush1.msra.mxu0 %v571
    %614 = vmatprep.subr.mxu0 0.0
    %615 = vmatpush1.msra.mxu0 %v572
    %616 = vmatprep.subr.mxu0 0.0
    %617 = vmatpush1.msra.mxu0 %v573
    %618 = vmatprep.subr.mxu0 0.0
    %619 = vmatpush1.msra.mxu0 %v574
    %620 = vmatprep.subr.mxu0 0.0
    %621 = vmatpush1.msra.mxu0 %v575
    %622 = vmatprep.subr.mxu0 0.0
    %623 = vmatpush1.msra.mxu0 %v576
    %624 = vmatprep.subr.mxu0 0.0
    %625 = vmatpush1.msra.mxu0 %v577
    %626 = vmatprep.subr.mxu0 0.0
    %627 = vmatpush1.msra.mxu0 %v578
    %628 = vmatprep.subr.mxu0 0.0
    %629 = vmatpush1.msra.mxu0 %v579
    %630 = vmatprep.subr.mxu0 0.0
    %631 = vmatpush1.msra.mxu0 %v580
    %632 = vmatprep.subr.mxu0 0.0
    %633 = vmatpush1.msra.mxu0 %v581
    %634 = vmatprep.subr.mxu0 0.0
    %635 = vmatpush1.msra.mxu0 %v582
    %636 = vmatprep.subr.mxu0 0.0
    %637 = vmatpush1.msra.mxu0 %v583
    %638 = vmatprep.subr.mxu0 0.0
    %639 = vmatpush1.msra.mxu0 %v584
    %640 = vmatprep.subr.mxu0 0.0
    %641 = vmatpush1.msra.mxu0 %v585
    %642 = vmatprep.subr.mxu0 0.0
    %643 = vmatpush1.msra.mxu0 %v586
    %644 = vmatprep.subr.mxu0 0.0
    %645 = vmatpush1.msra.mxu0 %v587
    %646 = vmatprep.subr.mxu0 0.0
    %647 = vmatpush1.msra.mxu0 %v588
    %648 = vmatprep.subr.mxu0 0.0
    %649 = vmatpush1.msra.mxu0 %v589
    %650 = vmatprep.subr.mxu0 0.0
    %651 = vmatpush1.msra.mxu0 %v590
    %652 = vmatprep.subr.mxu0 0.0
    %653 = vmatpush1.msra.mxu0 %v591
    %654 = vmatprep.subr.mxu0 0.0
    %655 = vmatpush1.msra.mxu0 %v592
    %656 = vmatprep.subr.mxu0 0.0
    %657 = vmatpush1.msra.mxu0 %v593
    %658 = vmatprep.subr.mxu0 0.0
    %659 = vmatpush1.msra.mxu0 %v594
    %660 = vmatprep.subr.mxu0 0.0
    %661 = vmatpush1.msra.mxu0 %v595
    %662 = vmatprep.subr.mxu0 0.0
    %663 = vmatpush1.msra.mxu0 %v596
    %664 = vmatprep.subr.mxu0 0.0
    %665 = vmatpush1.msra.mxu0 %v597
    %666 = vmatprep.subr.mxu0 0.0
    %667 = vmatpush1.msra.mxu0 %v598
    %668 = vmatprep.subr.mxu0 0.0
    %669 = vmatpush1.msra.mxu0 %v599
    %670 = vmatprep.mubr.f32.mxu0 %v567
    %671 = vmatmul.mubr.f32.gmra.mrb[0].mxu0 %v566
    %v672 = vpop.f32.mrb[0].mxu0
    %v673 = vadd.f32 %v604, %v672
    %v674 = vpop.f32.mrb[0].mxu0
    %675 = vdwg.mxu0
    %vm676 = vcmask 64512
    %677 = vst.msk [vmem:[#allocation8] sm:$0xff] %vm676, %v673
    // Predicated region
    $region42: #{tpu_custom_call.1} parent=1 // pred_check
      _
    $region43: #{tpu_custom_call.1} parent=1 // pred_check_branch
      %679 = sbr.rel (0) target = $region45
    $region44: #{tpu_custom_call.1} parent=1 // pred_region
      %s681 = ssub.s32 128, 128
      %682 = vsyncadd [#allocation4], %s681
      %s684 = sshll.u32 [#allocation8], 4
      %s685 = int_to_ptr.vmem [resolvable:$true] %s684
      %687 = dma.vmem_to_hbm [thread:$0]  %s685, 128, %s7, [#allocation4]
    $region45: #{tpu_custom_call.1} parent=1 // pred_fallthru
      _
    // Predicated region
    $region46: #{tpu_custom_call.1} parent=1 // pred_check
      _
    $region47: #{tpu_custom_call.1} parent=1 // pred_check_branch
      %689 = sbr.rel (0) target = $region49
    $region48: #{tpu_custom_call.1} parent=1 // pred_region
      %690 = dma.done [#allocation4], 128
    $region49: #{tpu_custom_call.1} parent=1 // pred_fallthru
      _
    %691 = vsyncpa [#allocation3], 1
    %692 = vsyncpa [#allocation6], 1
    %693 = vsyncpa [#allocation4], 1

</llo_original>
